<compile_context>
chip_gen: v5e
topology: v5e:2x2
jax: 0.10.0
libtpu: 0.0.40
codegen_flags: <defaults>
</compile_context>

<pallas_src>
import jax
import jax.numpy as jnp
from jax.experimental import pallas as pl
from jax.experimental.pallas import tpu as pltpu

LN_EPS = 1e-6


def _round_up(x, m):
    return (x + m - 1) // m * m


def vit_head_kernel(x_ref, gamma_ref, beta_ref, w_ref, hb_ref, o_ref):
    # One (C-tile, B-tile) grid step.
    #   x_ref:    [TM, D]  CLS tokens for this B tile
    #   gamma_ref:[1, D]   LayerNorm weight
    #   beta_ref: [1, D]   LayerNorm bias
    #   w_ref:    [D, TN]  head-weight tile (resident across the inner B axis)
    #   hb_ref:   [1, TN]  head-bias tile
    #   o_ref:    [TM, TN] logits tile

    # LayerNorm recomputed each step (cheap; hides under the weight DMA, and
    # keeps both grid axes carry-free -> "parallel"/"parallel").
    x = x_ref[...].astype(jnp.float32)
    mean = jnp.mean(x, axis=-1, keepdims=True)
    xc = x - mean
    var = jnp.mean(xc * xc, axis=-1, keepdims=True)
    inv = jax.lax.rsqrt(var + LN_EPS)
    xn = (xc * inv) * gamma_ref[...].astype(jnp.float32) \
        + beta_ref[...].astype(jnp.float32)

    # MXU matmul: LHS cast to the weight's native dtype (no-op for f32 weights,
    # bf16 MXU path for bf16 weights); accumulate in f32.
    y = jnp.dot(xn.astype(w_ref.dtype), w_ref[...],
                preferred_element_type=jnp.float32)
    y = y + hb_ref[...].astype(jnp.float32)
    o_ref[...] = y.astype(o_ref.dtype)


def _generation_tiling(w_itemsize):
    """Generation-aware (TN cap, vmem_limit_bytes)."""
    try:
        info = pltpu.get_tpu_info()
        vmem_cap = int(getattr(info, "vmem_capacity_bytes", 64 * 1024 * 1024))
    except Exception:  # interpret mode / unknown chip -> conservative defaults
        vmem_cap = 64 * 1024 * 1024
    if vmem_cap >= 100 * 1024 * 1024:
        # v5e / v6e: 128 MiB physical VMEM -> large tiles, fewer grid steps.
        tn_cap = 4096 if w_itemsize <= 2 else 2048
        vmem_limit = 64 * 1024 * 1024
    else:
        # v7x: 64 MiB physical VMEM -> keep double-buffering headroom.
        tn_cap = 2048 if w_itemsize <= 2 else 1024
        vmem_limit = 40 * 1024 * 1024
    return tn_cap, vmem_limit


def build_vit_head(ln_gamma, ln_beta, head_w, head_b, *, weight_dtype=None):
    """Prepare ViTHead parameters once and return forward(x: [B,S,D]) -> [B,C].

    ln_gamma, ln_beta: [D]   LayerNorm weight / bias
    head_w:            [C, D] head weight, PyTorch nn.Linear layout
    head_b:            [C]    head bias
    weight_dtype:      optional cast for the head weight (e.g. jnp.bfloat16)
                       to halve HBM weight traffic; accumulation stays f32.
    """
    D = int(ln_gamma.shape[0])
    C = int(head_w.shape[0])
    assert head_w.shape == (C, D)
    assert head_b.shape == (C,)

    # ---- one-time parameter prep (transpose / cast / pad) ------------------
    w = jnp.transpose(head_w)                       # [D, C]
    if weight_dtype is not None:
        w = w.astype(weight_dtype)
    w_itemsize = jnp.dtype(w.dtype).itemsize

    tn_cap, vmem_limit = _generation_tiling(w_itemsize)

    C_lane = _round_up(max(C, 128), 128)            # lane-dense class dim
    TN = min(tn_cap, C_lane)
    # Ensure >= 4 C steps when possible so the weight DMA overlaps the MXU
    # instead of being one exposed transfer (ImageNet-1k case).
    if C_lane > 128 and C_lane // TN < 4:
        TN = min(tn_cap, max(128, _round_up(pl.cdiv(C_lane, 4), 128)))
    C_pad = _round_up(C_lane, TN)

    if C_pad != C:
        w = jnp.pad(w, ((0, 0), (0, C_pad - C)))
        hb = jnp.pad(head_b.reshape(1, C), ((0, 0), (0, C_pad - C)))
    else:
        hb = head_b.reshape(1, C)
    gamma = ln_gamma.reshape(1, D)
    beta = ln_beta.reshape(1, D)

    n_c = C_pad // TN

    def forward(x):
        B, S, D_in = x.shape
        assert D_in == D
        out_dtype = x.dtype

        # CLS token; LayerNorm is per-token so slicing before the norm is
        # mathematically identical to norm-then-slice.
        x_cls = x[:, 0, :]                          # [B, D]
        TM = min(256, _round_up(B, 8))              # full MXU row height
        B_pad = _round_up(B, TM)
        if B_pad != B:
            x_cls = jnp.pad(x_cls, ((0, B_pad - B), (0, 0)))
        n_b = B_pad // TM

        # C outer / B inner: weight block index depends only on the outer axis
        # -> stays revisit-resident across all B tiles (streamed once total).
        grid = (n_c, n_b)

        cost = pl.CostEstimate(
            flops=int(2 * B_pad * D * C_pad + 6 * B_pad * D * n_c),
            transcendentals=int(B_pad * n_c),
            bytes_accessed=int(
                B_pad * D * jnp.dtype(x.dtype).itemsize * n_c   # CLS re-fetch per C tile
                + D * C_pad * w_itemsize                        # weight streamed once
                + C_pad * jnp.dtype(hb.dtype).itemsize
                + B_pad * C_pad * jnp.dtype(out_dtype).itemsize
            ),
        )

        out = pl.pallas_call(
            vit_head_kernel,
            out_shape=jax.ShapeDtypeStruct((B_pad, C_pad), out_dtype),
            grid=grid,
            in_specs=[
                pl.BlockSpec((TM, D), lambda c, b: (b, 0)),   # CLS tokens
                pl.BlockSpec((1, D), lambda c, b: (0, 0)),    # LN gamma
                pl.BlockSpec((1, D), lambda c, b: (0, 0)),    # LN beta
                pl.BlockSpec((D, TN), lambda c, b: (0, c)),   # weight: resident over B
                pl.BlockSpec((1, TN), lambda c, b: (0, c)),   # bias tile
            ],
            out_specs=pl.BlockSpec((TM, TN), lambda c, b: (b, c)),
            compiler_params=pltpu.CompilerParams(
                # No carried state -> both axes parallel; on v7x the two
                # TensorCores can split the class axis (2x weight-stream BW).
                dimension_semantics=("parallel", "parallel"),
                vmem_limit_bytes=vmem_limit,
            ),
            cost_estimate=cost,
        )(x_cls, gamma, beta, w, hb)

        return out[:B, :C]

    return forward


def reference_forward(x, ln_gamma, ln_beta, head_w, head_b):
    x32 = x.astype(jnp.float32)
    mean = jnp.mean(x32, axis=-1, keepdims=True)
    var = jnp.mean((x32 - mean) ** 2, axis=-1, keepdims=True)
    xn = (x32 - mean) / jnp.sqrt(var + LN_EPS)
    xn = xn * ln_gamma + ln_beta
    cls = xn[:, 0, :]
    return cls @ head_w.astype(jnp.float32).T + head_b


if __name__ == "__main__":
    # Small ViT-head-consistent shapes: batch=2, seq=8, embed_dim=32, classes=16.
    B, S, D, C = 2, 8, 32, 16

    key = jax.random.PRNGKey(0)
    kx, kw, kb, kg, kbe = jax.random.split(key, 5)

    x = jax.random.normal(kx, (B, S, D), dtype=jnp.float32)

    # Deterministic synthetic parameters (timm's init zeros the head, which
    # would make the output trivially zero; use small random values instead).
    ln_gamma = 1.0 + 0.01 * jax.random.normal(kg, (D,), dtype=jnp.float32)
    ln_beta = 0.01 * jax.random.normal(kbe, (D,), dtype=jnp.float32)
    head_w = 0.02 * jax.random.normal(kw, (C, D), dtype=jnp.float32)  # PyTorch [C, D]
    head_b = 0.01 * jax.random.normal(kb, (C,), dtype=jnp.float32)

    ref = reference_forward(x, ln_gamma, ln_beta, head_w, head_b)

    # f32-weight path (exact parity with the reference).
    fwd = jax.jit(build_vit_head(ln_gamma, ln_beta, head_w, head_b))
    out = jax.block_until_ready(fwd(x))
    assert out.shape == (B, C)
    assert jnp.allclose(out, ref, atol=1e-4, rtol=1e-4)

    # bf16-weight path (halved HBM weight traffic; looser tolerance).
    fwd_bf16 = jax.jit(build_vit_head(ln_gamma, ln_beta, head_w, head_b,
                                      weight_dtype=jnp.bfloat16))
    out_bf16 = jax.block_until_ready(fwd_bf16(x))
    assert out_bf16.shape == (B, C)
    assert jnp.allclose(out_bf16, ref, atol=2e-2, rtol=2e-2)

    print("KERNEL_OK")
</pallas_src>

<mosaic_0001>
module attributes {stable_mosaic.version = 11 : i64} {
  func.func @vit_head_kernel(%arg0: i32, %arg1: i32, %arg2: memref<8x32xf32, #tpu.memory_space<vmem>>, %arg3: memref<1x32xf32, #tpu.memory_space<vmem>>, %arg4: memref<1x32xf32, #tpu.memory_space<vmem>>, %arg5: memref<32x128xf32, #tpu.memory_space<vmem>>, %arg6: memref<1x128xf32, #tpu.memory_space<vmem>>, %arg7: memref<8x128xf32, #tpu.memory_space<vmem>>) attributes {dimension_semantics = [#tpu.dimension_semantics<parallel>, #tpu.dimension_semantics<parallel>], iteration_bounds = array<i64: 1, 1>, scalar_prefetch = 0 : i64, scratch_operands = 0 : i64, tpu.core_type = #tpu.core_type<tc>, window_params = [{transform_indices = @transform_0, window_bounds = array<i64: 8, 32>}, {pipeline_mode = #tpu.pipeline_mode<synchronous>, transform_indices = @transform_1, window_bounds = array<i64: 1, 32>}, {pipeline_mode = #tpu.pipeline_mode<synchronous>, transform_indices = @transform_2, window_bounds = array<i64: 1, 32>}, {transform_indices = @transform_3, window_bounds = array<i64: 32, 128>}, {transform_indices = @transform_4, window_bounds = array<i64: 1, 128>}, {transform_indices = @transform_5, window_bounds = array<i64: 8, 128>}]} {
    %c0 = arith.constant 0 : index
    %c0_0 = arith.constant 0 : index
    %0 = vector.load %arg2[%c0, %c0_0] : memref<8x32xf32, #tpu.memory_space<vmem>>, vector<8x32xf32>
    %cst = arith.constant dense<0.000000e+00> : vector<8xf32>
    %1 = vector.multi_reduction <add>, %0, %cst [1] : vector<8x32xf32> to vector<8xf32>
    %2 = vector.shape_cast %1 : vector<8xf32> to vector<8x1xf32>
    %cst_1 = arith.constant 3.200000e+01 : f32
    %3 = vector.broadcast %cst_1 : f32 to vector<8x1xf32>
    %4 = arith.divf %2, %3 : vector<8x1xf32>
    %5 = vector.broadcast %4 : vector<8x1xf32> to vector<8x32xf32>
    %6 = arith.subf %0, %5 : vector<8x32xf32>
    %7 = arith.mulf %6, %6 : vector<8x32xf32>
    %cst_2 = arith.constant dense<0.000000e+00> : vector<8xf32>
    %8 = vector.multi_reduction <add>, %7, %cst_2 [1] : vector<8x32xf32> to vector<8xf32>
    %9 = vector.shape_cast %8 : vector<8xf32> to vector<8x1xf32>
    %cst_3 = arith.constant 3.200000e+01 : f32
    %10 = vector.broadcast %cst_3 : f32 to vector<8x1xf32>
    %11 = arith.divf %9, %10 : vector<8x1xf32>
    %cst_4 = arith.constant 9.99999997E-7 : f32
    %12 = vector.broadcast %cst_4 : f32 to vector<8x1xf32>
    %13 = arith.addf %11, %12 : vector<8x1xf32>
    %14 = math.rsqrt %13 : vector<8x1xf32>
    %15 = vector.broadcast %14 : vector<8x1xf32> to vector<8x32xf32>
    %16 = arith.mulf %6, %15 : vector<8x32xf32>
    %c0_5 = arith.constant 0 : index
    %c0_6 = arith.constant 0 : index
    %17 = vector.load %arg3[%c0_5, %c0_6] : memref<1x32xf32, #tpu.memory_space<vmem>>, vector<1x32xf32>
    %18 = vector.broadcast %17 : vector<1x32xf32> to vector<8x32xf32>
    %19 = arith.mulf %16, %18 : vector<8x32xf32>
    %c0_7 = arith.constant 0 : index
    %c0_8 = arith.constant 0 : index
    %20 = vector.load %arg4[%c0_7, %c0_8] : memref<1x32xf32, #tpu.memory_space<vmem>>, vector<1x32xf32>
    %21 = vector.broadcast %20 : vector<1x32xf32> to vector<8x32xf32>
    %22 = arith.addf %19, %21 : vector<8x32xf32>
    %c0_9 = arith.constant 0 : index
    %c0_10 = arith.constant 0 : index
    %23 = vector.load %arg5[%c0_9, %c0_10] : memref<32x128xf32, #tpu.memory_space<vmem>>, vector<32x128xf32>
    %cst_11 = arith.constant dense<0.000000e+00> : vector<8x128xf32>
    %24 = tpu.matmul %22, %23, %cst_11 {dimension_numbers = #tpu.dot_dimension_numbers<[1], [0], [0], [1], [0, 0, 1, 1], [], []>} : vector<8x32xf32>, vector<32x128xf32>, vector<8x128xf32> -> vector<8x128xf32>
    %c0_12 = arith.constant 0 : index
    %c0_13 = arith.constant 0 : index
    %25 = vector.load %arg6[%c0_12, %c0_13] : memref<1x128xf32, #tpu.memory_space<vmem>>, vector<1x128xf32>
    %26 = vector.broadcast %25 : vector<1x128xf32> to vector<8x128xf32>
    %27 = arith.addf %24, %26 : vector<8x128xf32>
    %c0_14 = arith.constant 0 : index
    %c0_15 = arith.constant 0 : index
    %28 = vector.load %arg7[%c0_14, %c0_15] : memref<8x128xf32, #tpu.memory_space<vmem>>, vector<8x128xf32>
    tpu.vector_store %arg7[%c0_14, %c0_15], %27 {strides = array<i32>} : memref<8x128xf32, #tpu.memory_space<vmem>>, vector<8x128xf32>,
    return
  }
  func.func @transform_0(%arg0: i32, %arg1: i32) -> (i32, i32) {
    %c0_i32 = arith.constant 0 : i32
    %c0_i32_0 = arith.constant 0 : i32
    return %arg1, %c0_i32 : i32, i32
  }
  func.func @transform_1(%arg0: i32, %arg1: i32) -> (i32, i32) {
    %c0_i32 = arith.constant 0 : i32
    %c0_i32_0 = arith.constant 0 : i32
    %c0_i32_1 = arith.constant 0 : i32
    return %c0_i32, %c0_i32_0 : i32, i32
  }
  func.func @transform_2(%arg0: i32, %arg1: i32) -> (i32, i32) {
    %c0_i32 = arith.constant 0 : i32
    %c0_i32_0 = arith.constant 0 : i32
    %c0_i32_1 = arith.constant 0 : i32
    return %c0_i32, %c0_i32_0 : i32, i32
  }
  func.func @transform_3(%arg0: i32, %arg1: i32) -> (i32, i32) {
    %c0_i32 = arith.constant 0 : i32
    %c0_i32_0 = arith.constant 0 : i32
    return %c0_i32, %arg0 : i32, i32
  }
  func.func @transform_4(%arg0: i32, %arg1: i32) -> (i32, i32) {
    %c0_i32 = arith.constant 0 : i32
    %c0_i32_0 = arith.constant 0 : i32
    return %c0_i32, %arg0 : i32, i32
  }
  func.func @transform_5(%arg0: i32, %arg1: i32) -> (i32, i32) {
    %c0_i32 = arith.constant 0 : i32
    return %arg1, %arg0 : i32, i32
  }
}

</mosaic_0001>

<llo_original>
// kernel: forward.1
$region0: #{forward.1}
  #allocation0 [shape = 'u32[]', space=smem, size = 0x4, offset = 0x4, fixed_abs, tag = 'smem constant byte address 0x4 - core index']
  #allocation1 [shape = 'u32[72,128]{1,0:T(1,128)}', space=vmem, size = 0x9000, scoped, tag = 'internal scratch']
  %s0 = inlined_call_operand.vmem [shape: f32[8,32], index: 0, kind: input, shape index: {}]
  %s1 = inlined_call_operand.vmem [shape: f32[1,32], index: 1, kind: input, shape index: {}]
  %s2 = inlined_call_operand.vmem [shape: f32[1,32], index: 2, kind: input, shape index: {}]
  %s3 = inlined_call_operand.hbm [shape: f32[32,128], index: 3, kind: input, shape index: {}]
  %s4 = inlined_call_operand.vmem [shape: f32[1,128], index: 4, kind: input, shape index: {}]
  %s5 = inlined_call_operand.vmem [shape: f32[8,128], index: 5, kind: output, shape index: {}]
  %s6 = sld [smem:[#allocation0]]
  $region34: #{forward.1} parent=0
    _
  %s8 = ssub.s32 1, %s6
  %s9 = scalar_select 0, %s8, %s6
  $region1: #{forward.1} parent=0
    #allocation2 [shape = 'u8[16384]{0}', space=vmem, size = 0x4000, scoped, tag = 'input window, operand 3, single buffered']
    #allocation3 [shape = 's32[1]{0}', space=sflag, size = 0x4, scoped, tag = 'scoped memory for forward.1']
    %10 = vsyncpa [#allocation3], 0
    // Predicated region
    $region2: #{forward.1} parent=1 // pred_check
      _
    $region3: #{forward.1} parent=1 // pred_check_branch
      %12 = sbr.rel (0) target = $region5
    $region4: #{forward.1} parent=1 // pred_region
      _
    $region5: #{forward.1} parent=1 // pred_fallthru
      _
    // Predicated region
    $region6: #{forward.1} parent=1 // pred_check
      _
    $region7: #{forward.1} parent=1 // pred_check_branch
      %14 = sbr.rel (0) target = $region9
    $region8: #{forward.1} parent=1 // pred_region
      _
    $region9: #{forward.1} parent=1 // pred_fallthru
      _
    // Predicated region
    $region10: #{forward.1} parent=1 // pred_check
      _
    $region11: #{forward.1} parent=1 // pred_check_branch
      %16 = sbr.rel (0) target = $region13
    $region12: #{forward.1} parent=1 // pred_region
      _
    $region13: #{forward.1} parent=1 // pred_fallthru
      _
    // Predicated region
    $region14: #{forward.1} parent=1 // pred_check
      _
    $region15: #{forward.1} parent=1 // pred_check_branch
      %18 = sbr.rel (0) target = $region17
    $region16: #{forward.1} parent=1 // pred_region
      %20 = vsyncadd [#allocation3], 0
      %s21 = sshll.u32 %s3, 4
      %s22 = int_to_ptr.hbm [resolvable:$true] %s21
      %s23 = sshll.u32 [#allocation2], 4
      %s24 = int_to_ptr.vmem [resolvable:$true] %s23
      %29 = dma.hbm_to_vmem [thread:$0]  %s22, 512, %s24, [#allocation3], 128, 128, 8
    $region17: #{forward.1} parent=1 // pred_fallthru
      _
    // Predicated region
    $region18: #{forward.1} parent=1 // pred_check
      _
    $region19: #{forward.1} parent=1 // pred_check_branch
      %31 = sbr.rel (0) target = $region21
    $region20: #{forward.1} parent=1 // pred_region
      _
    $region21: #{forward.1} parent=1 // pred_fallthru
      _
    // Predicated region
    $region22: #{forward.1} parent=1 // pred_check
      _
    $region23: #{forward.1} parent=1 // pred_check_branch
      %33 = sbr.rel (0) target = $region25
    $region24: #{forward.1} parent=1 // pred_region
      %35 = dma.done [#allocation3], 512
    $region25: #{forward.1} parent=1 // pred_fallthru
      _
    %v36 = vld [vmem:[%s0] sm:$0xff]
    %vm37 = vcmask 261120
    %v38 = vsel %vm37, %v36, 0.0
    %39 = vadd.xlane.f32.xlu0 %v38
    %v40 = vpop.xlane.xlu0 %39
    %v41 = vrcp.pop 32.0
    %v42 = vmul.f32 32.0, %v41
    %v43 = vsub.f32 1.0, %v42
    %v44 = vmul.f32 %v41, %v43
    %v45 = vadd.f32 %v41, %v44
    %vm46 = vweird.f32 %v41
    %v47 = vsel %vm46, %v41, %v45
    %v48 = vmul.f32 %v40, %v47
    %v49 = vsub.f32 %v36, %v48
    %v50 = vmul.f32 %v49, %v49
    %v51 = vsel %vm37, %v50, 0.0
    %52 = vadd.xlane.f32.xlu0 %v51
    %v53 = vpop.xlane.xlu0 %52
    %v54 = vmul.f32 %v53, %v47
    %v55 = vadd.f32 %v54, 1e-06
    %v56 = vrsqrt.pop %v55
    %v57 = vmul.f32 %v56, %v55
    %v58 = vmul.f32 %v57, %v56
    %v59 = vmul.f32 0.5, %v58
    %v60 = vsub.f32 1.5, %v59
    %v61 = vmul.f32 %v56, %v60
    %vm62 = vweird.f32 %v55
    %vm63 = vweird.f32 %v56
    %vm64 = vmor %vm62, %vm63
    %v65 = vsel %vm64, %v56, %v61
    %v66 = vmul.f32 %v49, %v65
    %v67 = vld [vmem:[%s1] sm:$0x1]
    %v69 = vperm.slane %v67, 0
    %v71 = vmul.f32 %v66, %v69
    %v72 = vld [vmem:[%s2] sm:$0x1]
    %v74 = vperm.slane %v72, 0
    %v76 = vadd.f32 %v71, %v74
    %v77 = vld [vmem:[#allocation2] sm:$0xff]
    %v78 = vld [vmem:[#allocation2 + $0x8] sm:$0xff]
    %v79 = vld [vmem:[#allocation2 + $0x10] sm:$0xff]
    %v80 = vld [vmem:[#allocation2 + $0x18] sm:$0xff]
    %v81 = vld [vmem:[%s4] sm:$0x1]
    %v83 = vperm.slane %v81, 0
    %v86 = vsel %vm37, %v76, 0
    %88 = vmatpush.msra.mxu0 0.0
    %89 = vmatpush.msra.mxu0 0.0
    %90 = vmatpush.msra.mxu0 0.0
    %91 = vmatpush.msra.mxu0 0.0
    %92 = vmatpush.msra.mxu0 0.0
    %93 = vmatpush.msra.mxu0 0.0
    %94 = vmatpush.msra.mxu0 0.0
    %95 = vmatpush.msra.mxu0 0.0
    %96 = vmatpush.msra.mxu0 0.0
    %97 = vmatpush.msra.mxu0 0.0
    %98 = vmatpush.msra.mxu0 0.0
    %99 = vmatpush.msra.mxu0 0.0
    %100 = vmatpush.msra.mxu0 %v80
    %101 = vmatpush.msra.mxu0 %v79
    %102 = vmatpush.msra.mxu0 %v78
    %103 = vmatpush.msra.mxu0 %v77
    %104 = vmatmul.f32.gmra.mxu0 %v86
    %v105 = vpop.f32.mrf.mxu0
    %v106 = vadd.f32 %v83, %v105
    %107 = vdwg.mxu0
    %108 = vst [vmem:[%s5] sm:$0xff] %v106
    // Predicated region
    $region26: #{forward.1} parent=1 // pred_check
      _
    $region27: #{forward.1} parent=1 // pred_check_branch
      %110 = sbr.rel (0) target = $region29
    $region28: #{forward.1} parent=1 // pred_region
      _
    $region29: #{forward.1} parent=1 // pred_fallthru
      _
    // Predicated region
    $region30: #{forward.1} parent=1 // pred_check
      _
    $region31: #{forward.1} parent=1 // pred_check_branch
      %112 = sbr.rel (0) target = $region33
    $region32: #{forward.1} parent=1 // pred_region
      _
    $region33: #{forward.1} parent=1 // pred_fallthru
      _
    %113 = vsyncpa [#allocation3], 1

</llo_original>
